<compile_context>
chip_gen: v7x
topology: tpu7x:2x2x1
jax: 0.10.0
libtpu: 0.0.40
codegen_flags: <defaults>
</compile_context>

<pallas_src>
import functools

import jax
import jax.numpy as jnp
from jax import lax
from jax.experimental import pallas as pl
from jax.experimental.pallas import tpu as pltpu

# Environment-implied sizes (classic CartPole DQN): obs dim 4, 2 actions.
N_STATES = 4
N_ACTIONS = 2
HIDDEN = 10

LANE = 128  # lanes per vreg (last axis)

# Row offsets inside the lane-replicated weight table.
_W1_OFF = 0
_B1_OFF = _W1_OFF + N_STATES * HIDDEN       # 40
_W2_OFF = _B1_OFF + HIDDEN                  # 50
_B2_OFF = _W2_OFF + HIDDEN * N_ACTIONS      # 70
N_WROWS = _B2_OFF + N_ACTIONS               # 72


def _sublanes(dtype):
    """Sublanes per packed vreg row-group: 8 for 32-bit, 16 for 16-bit."""
    return 8 * (4 // jnp.dtype(dtype).itemsize)


def _mlp_kernel(wtab_ref, x_ref, o_ref, *, sub, n_sub):
    """One batch tile.

    wtab_ref: (N_WROWS, sub, 128) VMEM -- each row r is one weight/bias value
              replicated over a full (sub, 128) vreg (no splats needed).
    x_ref:    (N_STATES, tbs, 128) VMEM -- batch on (sublane, lane).
    o_ref:    (N_ACTIONS, tbs, 128) VMEM.
    """

    def body(s, carry):
        off = pl.multiple_of(s * sub, sub)          # aligned, unmasked accesses
        xs = [x_ref[k, pl.ds(off, sub), :] for k in range(N_STATES)]

        # fc1 + ReLU: VPU broadcast-free FMA chain; bias initializes the acc.
        h = []
        for j in range(HIDDEN):
            acc = wtab_ref[_B1_OFF + j] + wtab_ref[_W1_OFF + j] * xs[0]
            for k in range(1, N_STATES):
                acc = acc + wtab_ref[_W1_OFF + k * HIDDEN + j] * xs[k]
            h.append(jnp.maximum(acc, 0))

        # out layer: lane-dense full-width stores.
        for i in range(N_ACTIONS):
            out = wtab_ref[_B2_OFF + i] + wtab_ref[_W2_OFF + i] * h[0]
            for j in range(1, HIDDEN):
                out = out + wtab_ref[_W2_OFF + j * N_ACTIONS + i] * h[j]
            o_ref[i, pl.ds(off, sub), :] = out.astype(o_ref.dtype)
        return carry

    lax.fori_loop(0, n_sub, body, 0, unroll=min(2, n_sub))


def pack_params(w1, b1, w2, b2, *, compute_dtype=jnp.float32):
    """Build the lane-replicated VMEM weight table (N_WROWS, sub, 128)."""
    sub = _sublanes(compute_dtype)
    flat = jnp.concatenate(
        [w1.reshape(-1), b1.reshape(-1), w2.reshape(-1), b2.reshape(-1)]
    ).astype(compute_dtype)
    assert flat.shape[0] == N_WROWS
    return jnp.broadcast_to(flat[:, None, None], (N_WROWS, sub, LANE))


def net_forward_slab(x_slab, wtab, *, block_rows=131072):
    """Core kernel call on slab-layout activations.

    x_slab: (N_STATES, n_slabs, 128), n_slabs a multiple of sub.
    wtab:   (N_WROWS, sub, 128) from pack_params (same dtype as x_slab).
    Returns (N_ACTIONS, n_slabs, 128).
    """
    dtype = x_slab.dtype
    sub = wtab.shape[1]
    n_slabs = x_slab.shape[1]
    assert x_slab.shape == (N_STATES, n_slabs, LANE)
    assert wtab.shape == (N_WROWS, sub, LANE) and wtab.dtype == dtype
    assert n_slabs % sub == 0

    # Tile size: big enough to amortize ~0.35us/step, small enough for VMEM
    # (<= 1024 slabs ~ 6.6 MiB double-buffered in f32, fine even on v5e's
    # 16 MiB default scoped VMEM), and capped at ceil(n_slabs/2) so the
    # "parallel" grid has >=2 steps for v7x's two TensorCores.
    target = max((block_rows // LANE) // sub * sub, sub)
    target = min(target, 1024)
    if n_slabs > sub:
        half = -(-n_slabs // 2)
        half = ((half + sub - 1) // sub) * sub
        tbs = min(target, half)
    else:
        tbs = n_slabs
    tbs = max(sub, min(tbs, n_slabs))
    n_sub = tbs // sub
    grid = (pl.cdiv(n_slabs, tbs),)     # ragged tail -> partial boundary block

    kernel = functools.partial(_mlp_kernel, sub=sub, n_sub=n_sub)
    return pl.pallas_call(
        kernel,
        out_shape=jax.ShapeDtypeStruct((N_ACTIONS, n_slabs, LANE), dtype),
        grid=grid,
        in_specs=[
            # Weight table: constant block index -> stays resident in VMEM.
            pl.BlockSpec((N_WROWS, sub, LANE), lambda i: (0, 0, 0)),
            pl.BlockSpec((N_STATES, tbs, LANE), lambda i: (0, i, 0)),
        ],
        out_specs=pl.BlockSpec((N_ACTIONS, tbs, LANE), lambda i: (0, i, 0)),
        compiler_params=pltpu.CompilerParams(
            dimension_semantics=("parallel",)),
    )(wtab, x_slab)


def net_forward(x, w1, b1, w2, b2, *, compute_dtype=jnp.float32,
                block_rows=131072):
    """Forward pass of Net on (B, N_STATES) -> (B, N_ACTIONS).

    compute_dtype=jnp.bfloat16 enables the bf16-VALU path (use on v6e/v7x;
    keep float32 on v5e).  Result dtype == compute_dtype.
    Note: the layout conversion below (pad/transpose/reshape) is an extra HBM
    pass; for peak throughput fuse via net_forward_slab and keep activations
    in slab layout across both layers of the DQN.
    """
    B = x.shape[0]
    sub = _sublanes(compute_dtype)
    chunk = sub * LANE                       # pad only up to one full sub-slab
    Bp = pl.cdiv(B, chunk) * chunk
    xp = x.astype(compute_dtype)
    if Bp != B:
        xp = jnp.pad(xp, ((0, Bp - B), (0, 0)))
    x_slab = xp.T.reshape(N_STATES, Bp // LANE, LANE)

    wtab = pack_params(w1, b1, w2, b2, compute_dtype=compute_dtype)
    o_slab = net_forward_slab(x_slab, wtab, block_rows=block_rows)

    return o_slab.reshape(N_ACTIONS, Bp).T[:B]


def _reference(x, w1, b1, w2, b2):
    """Pure-JAX reference of the same forward semantics."""
    return jnp.maximum(x @ w1 + b1, 0.0) @ w2 + b2


def init_params(key):
    """Deterministic init matching the module: weights ~ N(0, 0.1), biases 0."""
    k1, k2 = jax.random.split(key)
    # PyTorch stores Linear weight as (out, in); we keep the (in, out) transpose.
    w1 = (0.1 * jax.random.normal(k1, (HIDDEN, N_STATES), jnp.float32)).T
    w2 = (0.1 * jax.random.normal(k2, (N_ACTIONS, HIDDEN), jnp.float32)).T
    b1 = jnp.zeros((HIDDEN,), jnp.float32)
    b2 = jnp.zeros((N_ACTIONS,), jnp.float32)
    return w1, b1, w2, b2


if __name__ == "__main__":
    key = jax.random.PRNGKey(0)
    k_x, k_x2, k_p = jax.random.split(key, 3)

    w1, b1, w2, b2 = init_params(k_p)

    # Small shape consistent with the module (single-block path).
    B = 2
    x = jax.random.normal(k_x, (B, N_STATES), jnp.float32)
    y = net_forward(x, w1, b1, w2, b2)
    jax.block_until_ready(y)
    assert y.shape == (B, N_ACTIONS)
    assert jnp.allclose(y, _reference(x, w1, b1, w2, b2), atol=1e-5, rtol=1e-5), \
        "mismatch vs reference (B=2, f32)"

    # Multi-step grid + partial boundary block path (n_slabs=24, tbs=16, grid=2).
    B2 = 2500
    x2 = jax.random.normal(k_x2, (B2, N_STATES), jnp.float32)
    ref2 = _reference(x2, w1, b1, w2, b2)
    y2 = net_forward(x2, w1, b1, w2, b2)
    jax.block_until_ready(y2)
    assert y2.shape == (B2, N_ACTIONS)
    assert jnp.allclose(y2, ref2, atol=1e-5, rtol=1e-5), \
        "mismatch vs reference (B=2500, gridded, f32)"

    # bf16 compute path (VALU/HBM win on v6e/v7x; runs correctly everywhere).
    y2b = net_forward(x2, w1, b1, w2, b2, compute_dtype=jnp.bfloat16)
    jax.block_until_ready(y2b)
    assert y2b.shape == (B2, N_ACTIONS)
    assert jnp.allclose(y2b.astype(jnp.float32), ref2, atol=3e-2, rtol=1e-1), \
        "mismatch vs reference (B=2500, bf16)"

    print("KERNEL_OK")
</pallas_src>

<mosaic_0001>
module attributes {stable_mosaic.version = 11 : i64} {
  func.func @_mlp_kernel(%arg0: i32, %arg1: memref<72x8x128xf32, #tpu.memory_space<vmem>>, %arg2: memref<4x8x128xf32, #tpu.memory_space<vmem>>, %arg3: memref<2x8x128xf32, #tpu.memory_space<vmem>>) attributes {dimension_semantics = [#tpu.dimension_semantics<parallel>], iteration_bounds = array<i64: 1>, scalar_prefetch = 0 : i64, scratch_operands = 0 : i64, tpu.core_type = #tpu.core_type<tc>, window_params = [{pipeline_mode = #tpu.pipeline_mode<synchronous>, transform_indices = @transform_0, window_bounds = array<i64: 72, 8, 128>}, {transform_indices = @transform_1, window_bounds = array<i64: 4, 8, 128>}, {transform_indices = @transform_2, window_bounds = array<i64: 2, 8, 128>}]} {
    %c0_i32 = arith.constant 0 : i32
    %c8_i32 = arith.constant 8 : i32
    %0 = arith.muli %c0_i32, %c8_i32 : i32
    %1 = tpu.assume_multiple %0, 8 : i32
    %c0 = arith.constant 0 : index
    %2 = arith.index_cast %1 : i32 to index
    %c0_0 = arith.constant 0 : index
    %3 = vector.load %arg2[%c0, %2, %c0_0] : memref<4x8x128xf32, #tpu.memory_space<vmem>>, vector<1x8x128xf32>
    %4 = vector.shape_cast %3 : vector<1x8x128xf32> to vector<8x128xf32>
    %c1 = arith.constant 1 : index
    %5 = arith.index_cast %1 : i32 to index
    %c0_1 = arith.constant 0 : index
    %6 = vector.load %arg2[%c1, %5, %c0_1] : memref<4x8x128xf32, #tpu.memory_space<vmem>>, vector<1x8x128xf32>
    %7 = vector.shape_cast %6 : vector<1x8x128xf32> to vector<8x128xf32>
    %c2 = arith.constant 2 : index
    %8 = arith.index_cast %1 : i32 to index
    %c0_2 = arith.constant 0 : index
    %9 = vector.load %arg2[%c2, %8, %c0_2] : memref<4x8x128xf32, #tpu.memory_space<vmem>>, vector<1x8x128xf32>
    %10 = vector.shape_cast %9 : vector<1x8x128xf32> to vector<8x128xf32>
    %c3 = arith.constant 3 : index
    %11 = arith.index_cast %1 : i32 to index
    %c0_3 = arith.constant 0 : index
    %12 = vector.load %arg2[%c3, %11, %c0_3] : memref<4x8x128xf32, #tpu.memory_space<vmem>>, vector<1x8x128xf32>
    %13 = vector.shape_cast %12 : vector<1x8x128xf32> to vector<8x128xf32>
    %c40 = arith.constant 40 : index
    %c0_4 = arith.constant 0 : index
    %c0_5 = arith.constant 0 : index
    %14 = vector.load %arg1[%c40, %c0_4, %c0_5] : memref<72x8x128xf32, #tpu.memory_space<vmem>>, vector<1x8x128xf32>
    %15 = vector.shape_cast %14 : vector<1x8x128xf32> to vector<8x128xf32>
    %c0_6 = arith.constant 0 : index
    %c0_7 = arith.constant 0 : index
    %c0_8 = arith.constant 0 : index
    %16 = vector.load %arg1[%c0_6, %c0_7, %c0_8] : memref<72x8x128xf32, #tpu.memory_space<vmem>>, vector<1x8x128xf32>
    %17 = vector.shape_cast %16 : vector<1x8x128xf32> to vector<8x128xf32>
    %18 = arith.mulf %17, %4 : vector<8x128xf32>
    %19 = arith.addf %15, %18 : vector<8x128xf32>
    %c10 = arith.constant 10 : index
    %c0_9 = arith.constant 0 : index
    %c0_10 = arith.constant 0 : index
    %20 = vector.load %arg1[%c10, %c0_9, %c0_10] : memref<72x8x128xf32, #tpu.memory_space<vmem>>, vector<1x8x128xf32>
    %21 = vector.shape_cast %20 : vector<1x8x128xf32> to vector<8x128xf32>
    %22 = arith.mulf %21, %7 : vector<8x128xf32>
    %23 = arith.addf %19, %22 : vector<8x128xf32>
    %c20 = arith.constant 20 : index
    %c0_11 = arith.constant 0 : index
    %c0_12 = arith.constant 0 : index
    %24 = vector.load %arg1[%c20, %c0_11, %c0_12] : memref<72x8x128xf32, #tpu.memory_space<vmem>>, vector<1x8x128xf32>
    %25 = vector.shape_cast %24 : vector<1x8x128xf32> to vector<8x128xf32>
    %26 = arith.mulf %25, %10 : vector<8x128xf32>
    %27 = arith.addf %23, %26 : vector<8x128xf32>
    %c30 = arith.constant 30 : index
    %c0_13 = arith.constant 0 : index
    %c0_14 = arith.constant 0 : index
    %28 = vector.load %arg1[%c30, %c0_13, %c0_14] : memref<72x8x128xf32, #tpu.memory_space<vmem>>, vector<1x8x128xf32>
    %29 = vector.shape_cast %28 : vector<1x8x128xf32> to vector<8x128xf32>
    %30 = arith.mulf %29, %13 : vector<8x128xf32>
    %31 = arith.addf %27, %30 : vector<8x128xf32>
    %cst = arith.constant 0.000000e+00 : f32
    %32 = vector.broadcast %cst : f32 to vector<8x128xf32>
    %33 = arith.maximumf %31, %32 : vector<8x128xf32>
    %c41 = arith.constant 41 : index
    %c0_15 = arith.constant 0 : index
    %c0_16 = arith.constant 0 : index
    %34 = vector.load %arg1[%c41, %c0_15, %c0_16] : memref<72x8x128xf32, #tpu.memory_space<vmem>>, vector<1x8x128xf32>
    %35 = vector.shape_cast %34 : vector<1x8x128xf32> to vector<8x128xf32>
    %c1_17 = arith.constant 1 : index
    %c0_18 = arith.constant 0 : index
    %c0_19 = arith.constant 0 : index
    %36 = vector.load %arg1[%c1_17, %c0_18, %c0_19] : memref<72x8x128xf32, #tpu.memory_space<vmem>>, vector<1x8x128xf32>
    %37 = vector.shape_cast %36 : vector<1x8x128xf32> to vector<8x128xf32>
    %38 = arith.mulf %37, %4 : vector<8x128xf32>
    %39 = arith.addf %35, %38 : vector<8x128xf32>
    %c11 = arith.constant 11 : index
    %c0_20 = arith.constant 0 : index
    %c0_21 = arith.constant 0 : index
    %40 = vector.load %arg1[%c11, %c0_20, %c0_21] : memref<72x8x128xf32, #tpu.memory_space<vmem>>, vector<1x8x128xf32>
    %41 = vector.shape_cast %40 : vector<1x8x128xf32> to vector<8x128xf32>
    %42 = arith.mulf %41, %7 : vector<8x128xf32>
    %43 = arith.addf %39, %42 : vector<8x128xf32>
    %c21 = arith.constant 21 : index
    %c0_22 = arith.constant 0 : index
    %c0_23 = arith.constant 0 : index
    %44 = vector.load %arg1[%c21, %c0_22, %c0_23] : memref<72x8x128xf32, #tpu.memory_space<vmem>>, vector<1x8x128xf32>
    %45 = vector.shape_cast %44 : vector<1x8x128xf32> to vector<8x128xf32>
    %46 = arith.mulf %45, %10 : vector<8x128xf32>
    %47 = arith.addf %43, %46 : vector<8x128xf32>
    %c31 = arith.constant 31 : index
    %c0_24 = arith.constant 0 : index
    %c0_25 = arith.constant 0 : index
    %48 = vector.load %arg1[%c31, %c0_24, %c0_25] : memref<72x8x128xf32, #tpu.memory_space<vmem>>, vector<1x8x128xf32>
    %49 = vector.shape_cast %48 : vector<1x8x128xf32> to vector<8x128xf32>
    %50 = arith.mulf %49, %13 : vector<8x128xf32>
    %51 = arith.addf %47, %50 : vector<8x128xf32>
    %cst_26 = arith.constant 0.000000e+00 : f32
    %52 = vector.broadcast %cst_26 : f32 to vector<8x128xf32>
    %53 = arith.maximumf %51, %52 : vector<8x128xf32>
    %c42 = arith.constant 42 : index
    %c0_27 = arith.constant 0 : index
    %c0_28 = arith.constant 0 : index
    %54 = vector.load %arg1[%c42, %c0_27, %c0_28] : memref<72x8x128xf32, #tpu.memory_space<vmem>>, vector<1x8x128xf32>
    %55 = vector.shape_cast %54 : vector<1x8x128xf32> to vector<8x128xf32>
    %c2_29 = arith.constant 2 : index
    %c0_30 = arith.constant 0 : index
    %c0_31 = arith.constant 0 : index
    %56 = vector.load %arg1[%c2_29, %c0_30, %c0_31] : memref<72x8x128xf32, #tpu.memory_space<vmem>>, vector<1x8x128xf32>
    %57 = vector.shape_cast %56 : vector<1x8x128xf32> to vector<8x128xf32>
    %58 = arith.mulf %57, %4 : vector<8x128xf32>
    %59 = arith.addf %55, %58 : vector<8x128xf32>
    %c12 = arith.constant 12 : index
    %c0_32 = arith.constant 0 : index
    %c0_33 = arith.constant 0 : index
    %60 = vector.load %arg1[%c12, %c0_32, %c0_33] : memref<72x8x128xf32, #tpu.memory_space<vmem>>, vector<1x8x128xf32>
    %61 = vector.shape_cast %60 : vector<1x8x128xf32> to vector<8x128xf32>
    %62 = arith.mulf %61, %7 : vector<8x128xf32>
    %63 = arith.addf %59, %62 : vector<8x128xf32>
    %c22 = arith.constant 22 : index
    %c0_34 = arith.constant 0 : index
    %c0_35 = arith.constant 0 : index
    %64 = vector.load %arg1[%c22, %c0_34, %c0_35] : memref<72x8x128xf32, #tpu.memory_space<vmem>>, vector<1x8x128xf32>
    %65 = vector.shape_cast %64 : vector<1x8x128xf32> to vector<8x128xf32>
    %66 = arith.mulf %65, %10 : vector<8x128xf32>
    %67 = arith.addf %63, %66 : vector<8x128xf32>
    %c32 = arith.constant 32 : index
    %c0_36 = arith.constant 0 : index
    %c0_37 = arith.constant 0 : index
    %68 = vector.load %arg1[%c32, %c0_36, %c0_37] : memref<72x8x128xf32, #tpu.memory_space<vmem>>, vector<1x8x128xf32>
    %69 = vector.shape_cast %68 : vector<1x8x128xf32> to vector<8x128xf32>
    %70 = arith.mulf %69, %13 : vector<8x128xf32>
    %71 = arith.addf %67, %70 : vector<8x128xf32>
    %cst_38 = arith.constant 0.000000e+00 : f32
    %72 = vector.broadcast %cst_38 : f32 to vector<8x128xf32>
    %73 = arith.maximumf %71, %72 : vector<8x128xf32>
    %c43 = arith.constant 43 : index
    %c0_39 = arith.constant 0 : index
    %c0_40 = arith.constant 0 : index
    %74 = vector.load %arg1[%c43, %c0_39, %c0_40] : memref<72x8x128xf32, #tpu.memory_space<vmem>>, vector<1x8x128xf32>
    %75 = vector.shape_cast %74 : vector<1x8x128xf32> to vector<8x128xf32>
    %c3_41 = arith.constant 3 : index
    %c0_42 = arith.constant 0 : index
    %c0_43 = arith.constant 0 : index
    %76 = vector.load %arg1[%c3_41, %c0_42, %c0_43] : memref<72x8x128xf32, #tpu.memory_space<vmem>>, vector<1x8x128xf32>
    %77 = vector.shape_cast %76 : vector<1x8x128xf32> to vector<8x128xf32>
    %78 = arith.mulf %77, %4 : vector<8x128xf32>
    %79 = arith.addf %75, %78 : vector<8x128xf32>
    %c13 = arith.constant 13 : index
    %c0_44 = arith.constant 0 : index
    %c0_45 = arith.constant 0 : index
    %80 = vector.load %arg1[%c13, %c0_44, %c0_45] : memref<72x8x128xf32, #tpu.memory_space<vmem>>, vector<1x8x128xf32>
    %81 = vector.shape_cast %80 : vector<1x8x128xf32> to vector<8x128xf32>
    %82 = arith.mulf %81, %7 : vector<8x128xf32>
    %83 = arith.addf %79, %82 : vector<8x128xf32>
    %c23 = arith.constant 23 : index
    %c0_46 = arith.constant 0 : index
    %c0_47 = arith.constant 0 : index
    %84 = vector.load %arg1[%c23, %c0_46, %c0_47] : memref<72x8x128xf32, #tpu.memory_space<vmem>>, vector<1x8x128xf32>
    %85 = vector.shape_cast %84 : vector<1x8x128xf32> to vector<8x128xf32>
    %86 = arith.mulf %85, %10 : vector<8x128xf32>
    %87 = arith.addf %83, %86 : vector<8x128xf32>
    %c33 = arith.constant 33 : index
    %c0_48 = arith.constant 0 : index
    %c0_49 = arith.constant 0 : index
    %88 = vector.load %arg1[%c33, %c0_48, %c0_49] : memref<72x8x128xf32, #tpu.memory_space<vmem>>, vector<1x8x128xf32>
    %89 = vector.shape_cast %88 : vector<1x8x128xf32> to vector<8x128xf32>
    %90 = arith.mulf %89, %13 : vector<8x128xf32>
    %91 = arith.addf %87, %90 : vector<8x128xf32>
    %cst_50 = arith.constant 0.000000e+00 : f32
    %92 = vector.broadcast %cst_50 : f32 to vector<8x128xf32>
    %93 = arith.maximumf %91, %92 : vector<8x128xf32>
    %c44 = arith.constant 44 : index
    %c0_51 = arith.constant 0 : index
    %c0_52 = arith.constant 0 : index
    %94 = vector.load %arg1[%c44, %c0_51, %c0_52] : memref<72x8x128xf32, #tpu.memory_space<vmem>>, vector<1x8x128xf32>
    %95 = vector.shape_cast %94 : vector<1x8x128xf32> to vector<8x128xf32>
    %c4 = arith.constant 4 : index
    %c0_53 = arith.constant 0 : index
    %c0_54 = arith.constant 0 : index
    %96 = vector.load %arg1[%c4, %c0_53, %c0_54] : memref<72x8x128xf32, #tpu.memory_space<vmem>>, vector<1x8x128xf32>
    %97 = vector.shape_cast %96 : vector<1x8x128xf32> to vector<8x128xf32>
    %98 = arith.mulf %97, %4 : vector<8x128xf32>
    %99 = arith.addf %95, %98 : vector<8x128xf32>
    %c14 = arith.constant 14 : index
    %c0_55 = arith.constant 0 : index
    %c0_56 = arith.constant 0 : index
    %100 = vector.load %arg1[%c14, %c0_55, %c0_56] : memref<72x8x128xf32, #tpu.memory_space<vmem>>, vector<1x8x128xf32>
    %101 = vector.shape_cast %100 : vector<1x8x128xf32> to vector<8x128xf32>
    %102 = arith.mulf %101, %7 : vector<8x128xf32>
    %103 = arith.addf %99, %102 : vector<8x128xf32>
    %c24 = arith.constant 24 : index
    %c0_57 = arith.constant 0 : index
    %c0_58 = arith.constant 0 : index
    %104 = vector.load %arg1[%c24, %c0_57, %c0_58] : memref<72x8x128xf32, #tpu.memory_space<vmem>>, vector<1x8x128xf32>
    %105 = vector.shape_cast %104 : vector<1x8x128xf32> to vector<8x128xf32>
    %106 = arith.mulf %105, %10 : vector<8x128xf32>
    %107 = arith.addf %103, %106 : vector<8x128xf32>
    %c34 = arith.constant 34 : index
    %c0_59 = arith.constant 0 : index
    %c0_60 = arith.constant 0 : index
    %108 = vector.load %arg1[%c34, %c0_59, %c0_60] : memref<72x8x128xf32, #tpu.memory_space<vmem>>, vector<1x8x128xf32>
    %109 = vector.shape_cast %108 : vector<1x8x128xf32> to vector<8x128xf32>
    %110 = arith.mulf %109, %13 : vector<8x128xf32>
    %111 = arith.addf %107, %110 : vector<8x128xf32>
    %cst_61 = arith.constant 0.000000e+00 : f32
    %112 = vector.broadcast %cst_61 : f32 to vector<8x128xf32>
    %113 = arith.maximumf %111, %112 : vector<8x128xf32>
    %c45 = arith.constant 45 : index
    %c0_62 = arith.constant 0 : index
    %c0_63 = arith.constant 0 : index
    %114 = vector.load %arg1[%c45, %c0_62, %c0_63] : memref<72x8x128xf32, #tpu.memory_space<vmem>>, vector<1x8x128xf32>
    %115 = vector.shape_cast %114 : vector<1x8x128xf32> to vector<8x128xf32>
    %c5 = arith.constant 5 : index
    %c0_64 = arith.constant 0 : index
    %c0_65 = arith.constant 0 : index
    %116 = vector.load %arg1[%c5, %c0_64, %c0_65] : memref<72x8x128xf32, #tpu.memory_space<vmem>>, vector<1x8x128xf32>
    %117 = vector.shape_cast %116 : vector<1x8x128xf32> to vector<8x128xf32>
    %118 = arith.mulf %117, %4 : vector<8x128xf32>
    %119 = arith.addf %115, %118 : vector<8x128xf32>
    %c15 = arith.constant 15 : index
    %c0_66 = arith.constant 0 : index
    %c0_67 = arith.constant 0 : index
    %120 = vector.load %arg1[%c15, %c0_66, %c0_67] : memref<72x8x128xf32, #tpu.memory_space<vmem>>, vector<1x8x128xf32>
    %121 = vector.shape_cast %120 : vector<1x8x128xf32> to vector<8x128xf32>
    %122 = arith.mulf %121, %7 : vector<8x128xf32>
    %123 = arith.addf %119, %122 : vector<8x128xf32>
    %c25 = arith.constant 25 : index
    %c0_68 = arith.constant 0 : index
    %c0_69 = arith.constant 0 : index
    %124 = vector.load %arg1[%c25, %c0_68, %c0_69] : memref<72x8x128xf32, #tpu.memory_space<vmem>>, vector<1x8x128xf32>
    %125 = vector.shape_cast %124 : vector<1x8x128xf32> to vector<8x128xf32>
    %126 = arith.mulf %125, %10 : vector<8x128xf32>
    %127 = arith.addf %123, %126 : vector<8x128xf32>
    %c35 = arith.constant 35 : index
    %c0_70 = arith.constant 0 : index
    %c0_71 = arith.constant 0 : index
    %128 = vector.load %arg1[%c35, %c0_70, %c0_71] : memref<72x8x128xf32, #tpu.memory_space<vmem>>, vector<1x8x128xf32>
    %129 = vector.shape_cast %128 : vector<1x8x128xf32> to vector<8x128xf32>
    %130 = arith.mulf %129, %13 : vector<8x128xf32>
    %131 = arith.addf %127, %130 : vector<8x128xf32>
    %cst_72 = arith.constant 0.000000e+00 : f32
    %132 = vector.broadcast %cst_72 : f32 to vector<8x128xf32>
    %133 = arith.maximumf %131, %132 : vector<8x128xf32>
    %c46 = arith.constant 46 : index
    %c0_73 = arith.constant 0 : index
    %c0_74 = arith.constant 0 : index
    %134 = vector.load %arg1[%c46, %c0_73, %c0_74] : memref<72x8x128xf32, #tpu.memory_space<vmem>>, vector<1x8x128xf32>
    %135 = vector.shape_cast %134 : vector<1x8x128xf32> to vector<8x128xf32>
    %c6 = arith.constant 6 : index
    %c0_75 = arith.constant 0 : index
    %c0_76 = arith.constant 0 : index
    %136 = vector.load %arg1[%c6, %c0_75, %c0_76] : memref<72x8x128xf32, #tpu.memory_space<vmem>>, vector<1x8x128xf32>
    %137 = vector.shape_cast %136 : vector<1x8x128xf32> to vector<8x128xf32>
    %138 = arith.mulf %137, %4 : vector<8x128xf32>
    %139 = arith.addf %135, %138 : vector<8x128xf32>
    %c16 = arith.constant 16 : index
    %c0_77 = arith.constant 0 : index
    %c0_78 = arith.constant 0 : index
    %140 = vector.load %arg1[%c16, %c0_77, %c0_78] : memref<72x8x128xf32, #tpu.memory_space<vmem>>, vector<1x8x128xf32>
    %141 = vector.shape_cast %140 : vector<1x8x128xf32> to vector<8x128xf32>
    %142 = arith.mulf %141, %7 : vector<8x128xf32>
    %143 = arith.addf %139, %142 : vector<8x128xf32>
    %c26 = arith.constant 26 : index
    %c0_79 = arith.constant 0 : index
    %c0_80 = arith.constant 0 : index
    %144 = vector.load %arg1[%c26, %c0_79, %c0_80] : memref<72x8x128xf32, #tpu.memory_space<vmem>>, vector<1x8x128xf32>
    %145 = vector.shape_cast %144 : vector<1x8x128xf32> to vector<8x128xf32>
    %146 = arith.mulf %145, %10 : vector<8x128xf32>
    %147 = arith.addf %143, %146 : vector<8x128xf32>
    %c36 = arith.constant 36 : index
    %c0_81 = arith.constant 0 : index
    %c0_82 = arith.constant 0 : index
    %148 = vector.load %arg1[%c36, %c0_81, %c0_82] : memref<72x8x128xf32, #tpu.memory_space<vmem>>, vector<1x8x128xf32>
    %149 = vector.shape_cast %148 : vector<1x8x128xf32> to vector<8x128xf32>
    %150 = arith.mulf %149, %13 : vector<8x128xf32>
    %151 = arith.addf %147, %150 : vector<8x128xf32>
    %cst_83 = arith.constant 0.000000e+00 : f32
    %152 = vector.broadcast %cst_83 : f32 to vector<8x128xf32>
    %153 = arith.maximumf %151, %152 : vector<8x128xf32>
    %c47 = arith.constant 47 : index
    %c0_84 = arith.constant 0 : index
    %c0_85 = arith.constant 0 : index
    %154 = vector.load %arg1[%c47, %c0_84, %c0_85] : memref<72x8x128xf32, #tpu.memory_space<vmem>>, vector<1x8x128xf32>
    %155 = vector.shape_cast %154 : vector<1x8x128xf32> to vector<8x128xf32>
    %c7 = arith.constant 7 : index
    %c0_86 = arith.constant 0 : index
    %c0_87 = arith.constant 0 : index
    %156 = vector.load %arg1[%c7, %c0_86, %c0_87] : memref<72x8x128xf32, #tpu.memory_space<vmem>>, vector<1x8x128xf32>
    %157 = vector.shape_cast %156 : vector<1x8x128xf32> to vector<8x128xf32>
    %158 = arith.mulf %157, %4 : vector<8x128xf32>
    %159 = arith.addf %155, %158 : vector<8x128xf32>
    %c17 = arith.constant 17 : index
    %c0_88 = arith.constant 0 : index
    %c0_89 = arith.constant 0 : index
    %160 = vector.load %arg1[%c17, %c0_88, %c0_89] : memref<72x8x128xf32, #tpu.memory_space<vmem>>, vector<1x8x128xf32>
    %161 = vector.shape_cast %160 : vector<1x8x128xf32> to vector<8x128xf32>
    %162 = arith.mulf %161, %7 : vector<8x128xf32>
    %163 = arith.addf %159, %162 : vector<8x128xf32>
    %c27 = arith.constant 27 : index
    %c0_90 = arith.constant 0 : index
    %c0_91 = arith.constant 0 : index
    %164 = vector.load %arg1[%c27, %c0_90, %c0_91] : memref<72x8x128xf32, #tpu.memory_space<vmem>>, vector<1x8x128xf32>
    %165 = vector.shape_cast %164 : vector<1x8x128xf32> to vector<8x128xf32>
    %166 = arith.mulf %165, %10 : vector<8x128xf32>
    %167 = arith.addf %163, %166 : vector<8x128xf32>
    %c37 = arith.constant 37 : index
    %c0_92 = arith.constant 0 : index
    %c0_93 = arith.constant 0 : index
    %168 = vector.load %arg1[%c37, %c0_92, %c0_93] : memref<72x8x128xf32, #tpu.memory_space<vmem>>, vector<1x8x128xf32>
    %169 = vector.shape_cast %168 : vector<1x8x128xf32> to vector<8x128xf32>
    %170 = arith.mulf %169, %13 : vector<8x128xf32>
    %171 = arith.addf %167, %170 : vector<8x128xf32>
    %cst_94 = arith.constant 0.000000e+00 : f32
    %172 = vector.broadcast %cst_94 : f32 to vector<8x128xf32>
    %173 = arith.maximumf %171, %172 : vector<8x128xf32>
    %c48 = arith.constant 48 : index
    %c0_95 = arith.constant 0 : index
    %c0_96 = arith.constant 0 : index
    %174 = vector.load %arg1[%c48, %c0_95, %c0_96] : memref<72x8x128xf32, #tpu.memory_space<vmem>>, vector<1x8x128xf32>
    %175 = vector.shape_cast %174 : vector<1x8x128xf32> to vector<8x128xf32>
    %c8 = arith.constant 8 : index
    %c0_97 = arith.constant 0 : index
    %c0_98 = arith.constant 0 : index
    %176 = vector.load %arg1[%c8, %c0_97, %c0_98] : memref<72x8x128xf32, #tpu.memory_space<vmem>>, vector<1x8x128xf32>
    %177 = vector.shape_cast %176 : vector<1x8x128xf32> to vector<8x128xf32>
    %178 = arith.mulf %177, %4 : vector<8x128xf32>
    %179 = arith.addf %175, %178 : vector<8x128xf32>
    %c18 = arith.constant 18 : index
    %c0_99 = arith.constant 0 : index
    %c0_100 = arith.constant 0 : index
    %180 = vector.load %arg1[%c18, %c0_99, %c0_100] : memref<72x8x128xf32, #tpu.memory_space<vmem>>, vector<1x8x128xf32>
    %181 = vector.shape_cast %180 : vector<1x8x128xf32> to vector<8x128xf32>
    %182 = arith.mulf %181, %7 : vector<8x128xf32>
    %183 = arith.addf %179, %182 : vector<8x128xf32>
    %c28 = arith.constant 28 : index
    %c0_101 = arith.constant 0 : index
    %c0_102 = arith.constant 0 : index
    %184 = vector.load %arg1[%c28, %c0_101, %c0_102] : memref<72x8x128xf32, #tpu.memory_space<vmem>>, vector<1x8x128xf32>
    %185 = vector.shape_cast %184 : vector<1x8x128xf32> to vector<8x128xf32>
    %186 = arith.mulf %185, %10 : vector<8x128xf32>
    %187 = arith.addf %183, %186 : vector<8x128xf32>
    %c38 = arith.constant 38 : index
    %c0_103 = arith.constant 0 : index
    %c0_104 = arith.constant 0 : index
    %188 = vector.load %arg1[%c38, %c0_103, %c0_104] : memref<72x8x128xf32, #tpu.memory_space<vmem>>, vector<1x8x128xf32>
    %189 = vector.shape_cast %188 : vector<1x8x128xf32> to vector<8x128xf32>
    %190 = arith.mulf %189, %13 : vector<8x128xf32>
    %191 = arith.addf %187, %190 : vector<8x128xf32>
    %cst_105 = arith.constant 0.000000e+00 : f32
    %192 = vector.broadcast %cst_105 : f32 to vector<8x128xf32>
    %193 = arith.maximumf %191, %192 : vector<8x128xf32>
    %c49 = arith.constant 49 : index
    %c0_106 = arith.constant 0 : index
    %c0_107 = arith.constant 0 : index
    %194 = vector.load %arg1[%c49, %c0_106, %c0_107] : memref<72x8x128xf32, #tpu.memory_space<vmem>>, vector<1x8x128xf32>
    %195 = vector.shape_cast %194 : vector<1x8x128xf32> to vector<8x128xf32>
    %c9 = arith.constant 9 : index
    %c0_108 = arith.constant 0 : index
    %c0_109 = arith.constant 0 : index
    %196 = vector.load %arg1[%c9, %c0_108, %c0_109] : memref<72x8x128xf32, #tpu.memory_space<vmem>>, vector<1x8x128xf32>
    %197 = vector.shape_cast %196 : vector<1x8x128xf32> to vector<8x128xf32>
    %198 = arith.mulf %197, %4 : vector<8x128xf32>
    %199 = arith.addf %195, %198 : vector<8x128xf32>
    %c19 = arith.constant 19 : index
    %c0_110 = arith.constant 0 : index
    %c0_111 = arith.constant 0 : index
    %200 = vector.load %arg1[%c19, %c0_110, %c0_111] : memref<72x8x128xf32, #tpu.memory_space<vmem>>, vector<1x8x128xf32>
    %201 = vector.shape_cast %200 : vector<1x8x128xf32> to vector<8x128xf32>
    %202 = arith.mulf %201, %7 : vector<8x128xf32>
    %203 = arith.addf %199, %202 : vector<8x128xf32>
    %c29 = arith.constant 29 : index
    %c0_112 = arith.constant 0 : index
    %c0_113 = arith.constant 0 : index
    %204 = vector.load %arg1[%c29, %c0_112, %c0_113] : memref<72x8x128xf32, #tpu.memory_space<vmem>>, vector<1x8x128xf32>
    %205 = vector.shape_cast %204 : vector<1x8x128xf32> to vector<8x128xf32>
    %206 = arith.mulf %205, %10 : vector<8x128xf32>
    %207 = arith.addf %203, %206 : vector<8x128xf32>
    %c39 = arith.constant 39 : index
    %c0_114 = arith.constant 0 : index
    %c0_115 = arith.constant 0 : index
    %208 = vector.load %arg1[%c39, %c0_114, %c0_115] : memref<72x8x128xf32, #tpu.memory_space<vmem>>, vector<1x8x128xf32>
    %209 = vector.shape_cast %208 : vector<1x8x128xf32> to vector<8x128xf32>
    %210 = arith.mulf %209, %13 : vector<8x128xf32>
    %211 = arith.addf %207, %210 : vector<8x128xf32>
    %cst_116 = arith.constant 0.000000e+00 : f32
    %212 = vector.broadcast %cst_116 : f32 to vector<8x128xf32>
    %213 = arith.maximumf %211, %212 : vector<8x128xf32>
    %c70 = arith.constant 70 : index
    %c0_117 = arith.constant 0 : index
    %c0_118 = arith.constant 0 : index
    %214 = vector.load %arg1[%c70, %c0_117, %c0_118] : memref<72x8x128xf32, #tpu.memory_space<vmem>>, vector<1x8x128xf32>
    %215 = vector.shape_cast %214 : vector<1x8x128xf32> to vector<8x128xf32>
    %c50 = arith.constant 50 : index
    %c0_119 = arith.constant 0 : index
    %c0_120 = arith.constant 0 : index
    %216 = vector.load %arg1[%c50, %c0_119, %c0_120] : memref<72x8x128xf32, #tpu.memory_space<vmem>>, vector<1x8x128xf32>
    %217 = vector.shape_cast %216 : vector<1x8x128xf32> to vector<8x128xf32>
    %218 = arith.mulf %217, %33 : vector<8x128xf32>
    %219 = arith.addf %215, %218 : vector<8x128xf32>
    %c52 = arith.constant 52 : index
    %c0_121 = arith.constant 0 : index
    %c0_122 = arith.constant 0 : index
    %220 = vector.load %arg1[%c52, %c0_121, %c0_122] : memref<72x8x128xf32, #tpu.memory_space<vmem>>, vector<1x8x128xf32>
    %221 = vector.shape_cast %220 : vector<1x8x128xf32> to vector<8x128xf32>
    %222 = arith.mulf %221, %53 : vector<8x128xf32>
    %223 = arith.addf %219, %222 : vector<8x128xf32>
    %c54 = arith.constant 54 : index
    %c0_123 = arith.constant 0 : index
    %c0_124 = arith.constant 0 : index
    %224 = vector.load %arg1[%c54, %c0_123, %c0_124] : memref<72x8x128xf32, #tpu.memory_space<vmem>>, vector<1x8x128xf32>
    %225 = vector.shape_cast %224 : vector<1x8x128xf32> to vector<8x128xf32>
    %226 = arith.mulf %225, %73 : vector<8x128xf32>
    %227 = arith.addf %223, %226 : vector<8x128xf32>
    %c56 = arith.constant 56 : index
    %c0_125 = arith.constant 0 : index
    %c0_126 = arith.constant 0 : index
    %228 = vector.load %arg1[%c56, %c0_125, %c0_126] : memref<72x8x128xf32, #tpu.memory_space<vmem>>, vector<1x8x128xf32>
    %229 = vector.shape_cast %228 : vector<1x8x128xf32> to vector<8x128xf32>
    %230 = arith.mulf %229, %93 : vector<8x128xf32>
    %231 = arith.addf %227, %230 : vector<8x128xf32>
    %c58 = arith.constant 58 : index
    %c0_127 = arith.constant 0 : index
    %c0_128 = arith.constant 0 : index
    %232 = vector.load %arg1[%c58, %c0_127, %c0_128] : memref<72x8x128xf32, #tpu.memory_space<vmem>>, vector<1x8x128xf32>
    %233 = vector.shape_cast %232 : vector<1x8x128xf32> to vector<8x128xf32>
    %234 = arith.mulf %233, %113 : vector<8x128xf32>
    %235 = arith.addf %231, %234 : vector<8x128xf32>
    %c60 = arith.constant 60 : index
    %c0_129 = arith.constant 0 : index
    %c0_130 = arith.constant 0 : index
    %236 = vector.load %arg1[%c60, %c0_129, %c0_130] : memref<72x8x128xf32, #tpu.memory_space<vmem>>, vector<1x8x128xf32>
    %237 = vector.shape_cast %236 : vector<1x8x128xf32> to vector<8x128xf32>
    %238 = arith.mulf %237, %133 : vector<8x128xf32>
    %239 = arith.addf %235, %238 : vector<8x128xf32>
    %c62 = arith.constant 62 : index
    %c0_131 = arith.constant 0 : index
    %c0_132 = arith.constant 0 : index
    %240 = vector.load %arg1[%c62, %c0_131, %c0_132] : memref<72x8x128xf32, #tpu.memory_space<vmem>>, vector<1x8x128xf32>
    %241 = vector.shape_cast %240 : vector<1x8x128xf32> to vector<8x128xf32>
    %242 = arith.mulf %241, %153 : vector<8x128xf32>
    %243 = arith.addf %239, %242 : vector<8x128xf32>
    %c64 = arith.constant 64 : index
    %c0_133 = arith.constant 0 : index
    %c0_134 = arith.constant 0 : index
    %244 = vector.load %arg1[%c64, %c0_133, %c0_134] : memref<72x8x128xf32, #tpu.memory_space<vmem>>, vector<1x8x128xf32>
    %245 = vector.shape_cast %244 : vector<1x8x128xf32> to vector<8x128xf32>
    %246 = arith.mulf %245, %173 : vector<8x128xf32>
    %247 = arith.addf %243, %246 : vector<8x128xf32>
    %c66 = arith.constant 66 : index
    %c0_135 = arith.constant 0 : index
    %c0_136 = arith.constant 0 : index
    %248 = vector.load %arg1[%c66, %c0_135, %c0_136] : memref<72x8x128xf32, #tpu.memory_space<vmem>>, vector<1x8x128xf32>
    %249 = vector.shape_cast %248 : vector<1x8x128xf32> to vector<8x128xf32>
    %250 = arith.mulf %249, %193 : vector<8x128xf32>
    %251 = arith.addf %247, %250 : vector<8x128xf32>
    %c68 = arith.constant 68 : index
    %c0_137 = arith.constant 0 : index
    %c0_138 = arith.constant 0 : index
    %252 = vector.load %arg1[%c68, %c0_137, %c0_138] : memref<72x8x128xf32, #tpu.memory_space<vmem>>, vector<1x8x128xf32>
    %253 = vector.shape_cast %252 : vector<1x8x128xf32> to vector<8x128xf32>
    %254 = arith.mulf %253, %213 : vector<8x128xf32>
    %255 = arith.addf %251, %254 : vector<8x128xf32>
    %c0_139 = arith.constant 0 : index
    %256 = arith.index_cast %1 : i32 to index
    %c0_140 = arith.constant 0 : index
    %257 = vector.load %arg3[%c0_139, %256, %c0_140] : memref<2x8x128xf32, #tpu.memory_space<vmem>>, vector<1x8x128xf32>
    %258 = vector.shape_cast %257 : vector<1x8x128xf32> to vector<8x128xf32>
    %259 = vector.shape_cast %255 : vector<8x128xf32> to vector<1x8x128xf32>
    tpu.vector_store %arg3[%c0_139, %256, %c0_140], %259 {strides = array<i32>} : memref<2x8x128xf32, #tpu.memory_space<vmem>>, vector<1x8x128xf32>,
    %c71 = arith.constant 71 : index
    %c0_141 = arith.constant 0 : index
    %c0_142 = arith.constant 0 : index
    %260 = vector.load %arg1[%c71, %c0_141, %c0_142] : memref<72x8x128xf32, #tpu.memory_space<vmem>>, vector<1x8x128xf32>
    %261 = vector.shape_cast %260 : vector<1x8x128xf32> to vector<8x128xf32>
    %c51 = arith.constant 51 : index
    %c0_143 = arith.constant 0 : index
    %c0_144 = arith.constant 0 : index
    %262 = vector.load %arg1[%c51, %c0_143, %c0_144] : memref<72x8x128xf32, #tpu.memory_space<vmem>>, vector<1x8x128xf32>
    %263 = vector.shape_cast %262 : vector<1x8x128xf32> to vector<8x128xf32>
    %264 = arith.mulf %263, %33 : vector<8x128xf32>
    %265 = arith.addf %261, %264 : vector<8x128xf32>
    %c53 = arith.constant 53 : index
    %c0_145 = arith.constant 0 : index
    %c0_146 = arith.constant 0 : index
    %266 = vector.load %arg1[%c53, %c0_145, %c0_146] : memref<72x8x128xf32, #tpu.memory_space<vmem>>, vector<1x8x128xf32>
    %267 = vector.shape_cast %266 : vector<1x8x128xf32> to vector<8x128xf32>
    %268 = arith.mulf %267, %53 : vector<8x128xf32>
    %269 = arith.addf %265, %268 : vector<8x128xf32>
    %c55 = arith.constant 55 : index
    %c0_147 = arith.constant 0 : index
    %c0_148 = arith.constant 0 : index
    %270 = vector.load %arg1[%c55, %c0_147, %c0_148] : memref<72x8x128xf32, #tpu.memory_space<vmem>>, vector<1x8x128xf32>
    %271 = vector.shape_cast %270 : vector<1x8x128xf32> to vector<8x128xf32>
    %272 = arith.mulf %271, %73 : vector<8x128xf32>
    %273 = arith.addf %269, %272 : vector<8x128xf32>
    %c57 = arith.constant 57 : index
    %c0_149 = arith.constant 0 : index
    %c0_150 = arith.constant 0 : index
    %274 = vector.load %arg1[%c57, %c0_149, %c0_150] : memref<72x8x128xf32, #tpu.memory_space<vmem>>, vector<1x8x128xf32>
    %275 = vector.shape_cast %274 : vector<1x8x128xf32> to vector<8x128xf32>
    %276 = arith.mulf %275, %93 : vector<8x128xf32>
    %277 = arith.addf %273, %276 : vector<8x128xf32>
    %c59 = arith.constant 59 : index
    %c0_151 = arith.constant 0 : index
    %c0_152 = arith.constant 0 : index
    %278 = vector.load %arg1[%c59, %c0_151, %c0_152] : memref<72x8x128xf32, #tpu.memory_space<vmem>>, vector<1x8x128xf32>
    %279 = vector.shape_cast %278 : vector<1x8x128xf32> to vector<8x128xf32>
    %280 = arith.mulf %279, %113 : vector<8x128xf32>
    %281 = arith.addf %277, %280 : vector<8x128xf32>
    %c61 = arith.constant 61 : index
    %c0_153 = arith.constant 0 : index
    %c0_154 = arith.constant 0 : index
    %282 = vector.load %arg1[%c61, %c0_153, %c0_154] : memref<72x8x128xf32, #tpu.memory_space<vmem>>, vector<1x8x128xf32>
    %283 = vector.shape_cast %282 : vector<1x8x128xf32> to vector<8x128xf32>
    %284 = arith.mulf %283, %133 : vector<8x128xf32>
    %285 = arith.addf %281, %284 : vector<8x128xf32>
    %c63 = arith.constant 63 : index
    %c0_155 = arith.constant 0 : index
    %c0_156 = arith.constant 0 : index
    %286 = vector.load %arg1[%c63, %c0_155, %c0_156] : memref<72x8x128xf32, #tpu.memory_space<vmem>>, vector<1x8x128xf32>
    %287 = vector.shape_cast %286 : vector<1x8x128xf32> to vector<8x128xf32>
    %288 = arith.mulf %287, %153 : vector<8x128xf32>
    %289 = arith.addf %285, %288 : vector<8x128xf32>
    %c65 = arith.constant 65 : index
    %c0_157 = arith.constant 0 : index
    %c0_158 = arith.constant 0 : index
    %290 = vector.load %arg1[%c65, %c0_157, %c0_158] : memref<72x8x128xf32, #tpu.memory_space<vmem>>, vector<1x8x128xf32>
    %291 = vector.shape_cast %290 : vector<1x8x128xf32> to vector<8x128xf32>
    %292 = arith.mulf %291, %173 : vector<8x128xf32>
    %293 = arith.addf %289, %292 : vector<8x128xf32>
    %c67 = arith.constant 67 : index
    %c0_159 = arith.constant 0 : index
    %c0_160 = arith.constant 0 : index
    %294 = vector.load %arg1[%c67, %c0_159, %c0_160] : memref<72x8x128xf32, #tpu.memory_space<vmem>>, vector<1x8x128xf32>
    %295 = vector.shape_cast %294 : vector<1x8x128xf32> to vector<8x128xf32>
    %296 = arith.mulf %295, %193 : vector<8x128xf32>
    %297 = arith.addf %293, %296 : vector<8x128xf32>
    %c69 = arith.constant 69 : index
    %c0_161 = arith.constant 0 : index
    %c0_162 = arith.constant 0 : index
    %298 = vector.load %arg1[%c69, %c0_161, %c0_162] : memref<72x8x128xf32, #tpu.memory_space<vmem>>, vector<1x8x128xf32>
    %299 = vector.shape_cast %298 : vector<1x8x128xf32> to vector<8x128xf32>
    %300 = arith.mulf %299, %213 : vector<8x128xf32>
    %301 = arith.addf %297, %300 : vector<8x128xf32>
    %c1_163 = arith.constant 1 : index
    %302 = arith.index_cast %1 : i32 to index
    %c0_164 = arith.constant 0 : index
    %303 = vector.load %arg3[%c1_163, %302, %c0_164] : memref<2x8x128xf32, #tpu.memory_space<vmem>>, vector<1x8x128xf32>
    %304 = vector.shape_cast %303 : vector<1x8x128xf32> to vector<8x128xf32>
    %305 = vector.shape_cast %301 : vector<8x128xf32> to vector<1x8x128xf32>
    tpu.vector_store %arg3[%c1_163, %302, %c0_164], %305 {strides = array<i32>} : memref<2x8x128xf32, #tpu.memory_space<vmem>>, vector<1x8x128xf32>,
    %c1_i32 = arith.constant 1 : i32
    return
  }
  func.func @transform_0(%arg0: i32) -> (i32, i32, i32) {
    %c0_i32 = arith.constant 0 : i32
    %c0_i32_0 = arith.constant 0 : i32
    %c0_i32_1 = arith.constant 0 : i32
    %c0_i32_2 = arith.constant 0 : i32
    return %c0_i32, %c0_i32_0, %c0_i32_1 : i32, i32, i32
  }
  func.func @transform_1(%arg0: i32) -> (i32, i32, i32) {
    %c0_i32 = arith.constant 0 : i32
    %c0_i32_0 = arith.constant 0 : i32
    %c0_i32_1 = arith.constant 0 : i32
    return %c0_i32, %arg0, %c0_i32_0 : i32, i32, i32
  }
  func.func @transform_2(%arg0: i32) -> (i32, i32, i32) {
    %c0_i32 = arith.constant 0 : i32
    %c0_i32_0 = arith.constant 0 : i32
    %c0_i32_1 = arith.constant 0 : i32
    return %c0_i32, %arg0, %c0_i32_0 : i32, i32, i32
  }
}

</mosaic_0001>

<llo_original>
// kernel: tpu_custom_call.1
$region0: #{tpu_custom_call.1}
  #allocation0 [shape = 'u32[]', space=smem, size = 0x4, offset = 0x4, fixed_abs, tag = 'smem constant byte address 0x4 - core index']
  #allocation1 [shape = 'u32[144,128]{1,0:T(1,128)}', space=vmem, size = 0x12000, scoped, tag = 'internal scratch']
  %s0 = inlined_call_operand.hbm [shape: f32[72,8,128], index: 0, kind: input, shape index: {}]
  %s1 = inlined_call_operand.hbm [shape: f32[4,8,128], index: 1, kind: input, shape index: {}]
  %s2 = inlined_call_operand.hbm [shape: f32[2,8,128], index: 2, kind: output, shape index: {}]
  %s3 = sld [smem:[#allocation0]]
  $region26: #{tpu_custom_call.1} parent=0
    _
  %s5 = ssub.s32 1, %s3
  %s6 = scalar_select 0, %s5, %s3
  $region1: #{tpu_custom_call.1} parent=0
    #allocation2 [shape = 'u8[294912]{0}', space=vmem, size = 0x48000, scoped, tag = 'input window, operand 0, single buffered']
    #allocation3 [shape = 's32[1]{0}', space=sflag, size = 0x4, scoped, tag = 'scoped memory for tpu_custom_call.1']
    #allocation4 [shape = 's32[1]{0}', space=sflag, size = 0x4, scoped, tag = 'scoped memory for tpu_custom_call.1']
    #allocation5 [shape = 'u8[16384]{0}', space=vmem, size = 0x4000, scoped, tag = 'input window, operand 1, single buffered']
    #allocation6 [shape = 's32[1]{0}', space=sflag, size = 0x4, scoped, tag = 'scoped memory for tpu_custom_call.1']
    #allocation7 [shape = 'u8[8192]{0}', space=vmem, size = 0x2000, scoped, tag = 'output window, operand 0, single buffered']
    %7 = vsyncpa [#allocation3], 0
    %8 = vsyncpa [#allocation6], 0
    %9 = vsyncpa [#allocation4], 0
    // Predicated region
    $region2: #{tpu_custom_call.1} parent=1 // pred_check
      _
    $region3: #{tpu_custom_call.1} parent=1 // pred_check_branch
      %11 = sbr.rel (0) target = $region5
    $region4: #{tpu_custom_call.1} parent=1 // pred_region
      %s13 = ssub.s32 9216, 9216
      %14 = vsyncadd [#allocation3], %s13
      %s15 = sshll.u32 [#allocation2], 4
      %s16 = int_to_ptr.vmem [resolvable:$true] %s15
      %21 = dma.hbm_to_vmem [thread:$0]  %s0, 9216, %s16, [#allocation3], 128, 128, 8
    $region5: #{tpu_custom_call.1} parent=1 // pred_fallthru
      _
    // Predicated region
    $region6: #{tpu_custom_call.1} parent=1 // pred_check
      _
    $region7: #{tpu_custom_call.1} parent=1 // pred_check_branch
      %23 = sbr.rel (0) target = $region9
    $region8: #{tpu_custom_call.1} parent=1 // pred_region
      %s25 = ssub.s32 512, 512
      %26 = vsyncadd [#allocation6], %s25
      %s27 = sshll.u32 [#allocation5], 4
      %s28 = int_to_ptr.vmem [resolvable:$true] %s27
      %33 = dma.hbm_to_vmem [thread:$0]  %s1, 512, %s28, [#allocation6], 128, 128, 8
    $region9: #{tpu_custom_call.1} parent=1 // pred_fallthru
      _
    // Predicated region
    $region10: #{tpu_custom_call.1} parent=1 // pred_check
      _
    $region11: #{tpu_custom_call.1} parent=1 // pred_check_branch
      %35 = sbr.rel (0) target = $region13
    $region12: #{tpu_custom_call.1} parent=1 // pred_region
      %36 = dma.done [#allocation3], 9216
    $region13: #{tpu_custom_call.1} parent=1 // pred_fallthru
      _
    // Predicated region
    $region14: #{tpu_custom_call.1} parent=1 // pred_check
      _
    $region15: #{tpu_custom_call.1} parent=1 // pred_check_branch
      %38 = sbr.rel (0) target = $region17
    $region16: #{tpu_custom_call.1} parent=1 // pred_region
      %39 = dma.done [#allocation6], 512
    $region17: #{tpu_custom_call.1} parent=1 // pred_fallthru
      _
    %v40 = vld [vmem:[#allocation5] sm:$0xff]
    %s41 = sadd.s32 0, 8
    %s42 = scalar_lea.vmem [#allocation5], %s41
    %v43 = vld [vmem:[%s42] sm:$0xff]
    %s44 = sadd.s32 0, 16
    %s45 = scalar_lea.vmem [#allocation5], %s44
    %v46 = vld [vmem:[%s45] sm:$0xff]
    %s47 = sadd.s32 0, 24
    %s48 = scalar_lea.vmem [#allocation5], %s47
    %v49 = vld [vmem:[%s48] sm:$0xff]
    %s50 = scalar_lea.vmem [#allocation2], 320
    %v51 = vld [vmem:[%s50] sm:$0xff]
    %v52 = vld [vmem:[#allocation2] sm:$0xff]
    %v53 = vmul.f32 %v52, %v40
    %v54 = vadd.f32 %v51, %v53
    %s55 = scalar_lea.vmem [#allocation2], 80
    %v56 = vld [vmem:[%s55] sm:$0xff]
    %v57 = vmul.f32 %v56, %v43
    %v58 = vadd.f32 %v54, %v57
    %s59 = scalar_lea.vmem [#allocation2], 160
    %v60 = vld [vmem:[%s59] sm:$0xff]
    %v61 = vmul.f32 %v60, %v46
    %v62 = vadd.f32 %v58, %v61
    %s63 = scalar_lea.vmem [#allocation2], 240
    %v64 = vld [vmem:[%s63] sm:$0xff]
    %v65 = vmul.f32 %v64, %v49
    %v66 = vadd.f32 %v62, %v65
    %v67 = vmax.f32 %v66, 0.0
    %s68 = scalar_lea.vmem [#allocation2], 328
    %v69 = vld [vmem:[%s68] sm:$0xff]
    %s70 = scalar_lea.vmem [#allocation2], 8
    %v71 = vld [vmem:[%s70] sm:$0xff]
    %v72 = vmul.f32 %v71, %v40
    %v73 = vadd.f32 %v69, %v72
    %s74 = scalar_lea.vmem [#allocation2], 88
    %v75 = vld [vmem:[%s74] sm:$0xff]
    %v76 = vmul.f32 %v75, %v43
    %v77 = vadd.f32 %v73, %v76
    %s78 = scalar_lea.vmem [#allocation2], 168
    %v79 = vld [vmem:[%s78] sm:$0xff]
    %v80 = vmul.f32 %v79, %v46
    %v81 = vadd.f32 %v77, %v80
    %s82 = scalar_lea.vmem [#allocation2], 248
    %v83 = vld [vmem:[%s82] sm:$0xff]
    %v84 = vmul.f32 %v83, %v49
    %v85 = vadd.f32 %v81, %v84
    %v86 = vmax.f32 %v85, 0.0
    %s87 = scalar_lea.vmem [#allocation2], 336
    %v88 = vld [vmem:[%s87] sm:$0xff]
    %s89 = scalar_lea.vmem [#allocation2], 16
    %v90 = vld [vmem:[%s89] sm:$0xff]
    %v91 = vmul.f32 %v90, %v40
    %v92 = vadd.f32 %v88, %v91
    %s93 = scalar_lea.vmem [#allocation2], 96
    %v94 = vld [vmem:[%s93] sm:$0xff]
    %v95 = vmul.f32 %v94, %v43
    %v96 = vadd.f32 %v92, %v95
    %s97 = scalar_lea.vmem [#allocation2], 176
    %v98 = vld [vmem:[%s97] sm:$0xff]
    %v99 = vmul.f32 %v98, %v46
    %v100 = vadd.f32 %v96, %v99
    %s101 = scalar_lea.vmem [#allocation2], 256
    %v102 = vld [vmem:[%s101] sm:$0xff]
    %v103 = vmul.f32 %v102, %v49
    %v104 = vadd.f32 %v100, %v103
    %v105 = vmax.f32 %v104, 0.0
    %s106 = scalar_lea.vmem [#allocation2], 344
    %v107 = vld [vmem:[%s106] sm:$0xff]
    %s108 = scalar_lea.vmem [#allocation2], 24
    %v109 = vld [vmem:[%s108] sm:$0xff]
    %v110 = vmul.f32 %v109, %v40
    %v111 = vadd.f32 %v107, %v110
    %s112 = scalar_lea.vmem [#allocation2], 104
    %v113 = vld [vmem:[%s112] sm:$0xff]
    %v114 = vmul.f32 %v113, %v43
    %v115 = vadd.f32 %v111, %v114
    %s116 = scalar_lea.vmem [#allocation2], 184
    %v117 = vld [vmem:[%s116] sm:$0xff]
    %v118 = vmul.f32 %v117, %v46
    %v119 = vadd.f32 %v115, %v118
    %s120 = scalar_lea.vmem [#allocation2], 264
    %v121 = vld [vmem:[%s120] sm:$0xff]
    %v122 = vmul.f32 %v121, %v49
    %v123 = vadd.f32 %v119, %v122
    %v124 = vmax.f32 %v123, 0.0
    %s125 = scalar_lea.vmem [#allocation2], 352
    %v126 = vld [vmem:[%s125] sm:$0xff]
    %s127 = scalar_lea.vmem [#allocation2], 32
    %v128 = vld [vmem:[%s127] sm:$0xff]
    %v129 = vmul.f32 %v128, %v40
    %v130 = vadd.f32 %v126, %v129
    %s131 = scalar_lea.vmem [#allocation2], 112
    %v132 = vld [vmem:[%s131] sm:$0xff]
    %v133 = vmul.f32 %v132, %v43
    %v134 = vadd.f32 %v130, %v133
    %s135 = scalar_lea.vmem [#allocation2], 192
    %v136 = vld [vmem:[%s135] sm:$0xff]
    %v137 = vmul.f32 %v136, %v46
    %v138 = vadd.f32 %v134, %v137
    %s139 = scalar_lea.vmem [#allocation2], 272
    %v140 = vld [vmem:[%s139] sm:$0xff]
    %v141 = vmul.f32 %v140, %v49
    %v142 = vadd.f32 %v138, %v141
    %v143 = vmax.f32 %v142, 0.0
    %s144 = scalar_lea.vmem [#allocation2], 360
    %v145 = vld [vmem:[%s144] sm:$0xff]
    %s146 = scalar_lea.vmem [#allocation2], 40
    %v147 = vld [vmem:[%s146] sm:$0xff]
    %v148 = vmul.f32 %v147, %v40
    %v149 = vadd.f32 %v145, %v148
    %s150 = scalar_lea.vmem [#allocation2], 120
    %v151 = vld [vmem:[%s150] sm:$0xff]
    %v152 = vmul.f32 %v151, %v43
    %v153 = vadd.f32 %v149, %v152
    %s154 = scalar_lea.vmem [#allocation2], 200
    %v155 = vld [vmem:[%s154] sm:$0xff]
    %v156 = vmul.f32 %v155, %v46
    %v157 = vadd.f32 %v153, %v156
    %s158 = scalar_lea.vmem [#allocation2], 280
    %v159 = vld [vmem:[%s158] sm:$0xff]
    %v160 = vmul.f32 %v159, %v49
    %v161 = vadd.f32 %v157, %v160
    %v162 = vmax.f32 %v161, 0.0
    %s163 = scalar_lea.vmem [#allocation2], 368
    %v164 = vld [vmem:[%s163] sm:$0xff]
    %s165 = scalar_lea.vmem [#allocation2], 48
    %v166 = vld [vmem:[%s165] sm:$0xff]
    %v167 = vmul.f32 %v166, %v40
    %v168 = vadd.f32 %v164, %v167
    %s169 = scalar_lea.vmem [#allocation2], 128
    %v170 = vld [vmem:[%s169] sm:$0xff]
    %v171 = vmul.f32 %v170, %v43
    %v172 = vadd.f32 %v168, %v171
    %s173 = scalar_lea.vmem [#allocation2], 208
    %v174 = vld [vmem:[%s173] sm:$0xff]
    %v175 = vmul.f32 %v174, %v46
    %v176 = vadd.f32 %v172, %v175
    %s177 = scalar_lea.vmem [#allocation2], 288
    %v178 = vld [vmem:[%s177] sm:$0xff]
    %v179 = vmul.f32 %v178, %v49
    %v180 = vadd.f32 %v176, %v179
    %v181 = vmax.f32 %v180, 0.0
    %s182 = scalar_lea.vmem [#allocation2], 376
    %v183 = vld [vmem:[%s182] sm:$0xff]
    %s184 = scalar_lea.vmem [#allocation2], 56
    %v185 = vld [vmem:[%s184] sm:$0xff]
    %v186 = vmul.f32 %v185, %v40
    %v187 = vadd.f32 %v183, %v186
    %s188 = scalar_lea.vmem [#allocation2], 136
    %v189 = vld [vmem:[%s188] sm:$0xff]
    %v190 = vmul.f32 %v189, %v43
    %v191 = vadd.f32 %v187, %v190
    %s192 = scalar_lea.vmem [#allocation2], 216
    %v193 = vld [vmem:[%s192] sm:$0xff]
    %v194 = vmul.f32 %v193, %v46
    %v195 = vadd.f32 %v191, %v194
    %s196 = scalar_lea.vmem [#allocation2], 296
    %v197 = vld [vmem:[%s196] sm:$0xff]
    %v198 = vmul.f32 %v197, %v49
    %v199 = vadd.f32 %v195, %v198
    %v200 = vmax.f32 %v199, 0.0
    %s201 = scalar_lea.vmem [#allocation2], 384
    %v202 = vld [vmem:[%s201] sm:$0xff]
    %s203 = scalar_lea.vmem [#allocation2], 64
    %v204 = vld [vmem:[%s203] sm:$0xff]
    %v205 = vmul.f32 %v204, %v40
    %v206 = vadd.f32 %v202, %v205
    %s207 = scalar_lea.vmem [#allocation2], 144
    %v208 = vld [vmem:[%s207] sm:$0xff]
    %v209 = vmul.f32 %v208, %v43
    %v210 = vadd.f32 %v206, %v209
    %s211 = scalar_lea.vmem [#allocation2], 224
    %v212 = vld [vmem:[%s211] sm:$0xff]
    %v213 = vmul.f32 %v212, %v46
    %v214 = vadd.f32 %v210, %v213
    %s215 = scalar_lea.vmem [#allocation2], 304
    %v216 = vld [vmem:[%s215] sm:$0xff]
    %v217 = vmul.f32 %v216, %v49
    %v218 = vadd.f32 %v214, %v217
    %v219 = vmax.f32 %v218, 0.0
    %s220 = scalar_lea.vmem [#allocation2], 392
    %v221 = vld [vmem:[%s220] sm:$0xff]
    %s222 = scalar_lea.vmem [#allocation2], 72
    %v223 = vld [vmem:[%s222] sm:$0xff]
    %v224 = vmul.f32 %v223, %v40
    %v225 = vadd.f32 %v221, %v224
    %s226 = scalar_lea.vmem [#allocation2], 152
    %v227 = vld [vmem:[%s226] sm:$0xff]
    %v228 = vmul.f32 %v227, %v43
    %v229 = vadd.f32 %v225, %v228
    %s230 = scalar_lea.vmem [#allocation2], 232
    %v231 = vld [vmem:[%s230] sm:$0xff]
    %v232 = vmul.f32 %v231, %v46
    %v233 = vadd.f32 %v229, %v232
    %s234 = scalar_lea.vmem [#allocation2], 312
    %v235 = vld [vmem:[%s234] sm:$0xff]
    %v236 = vmul.f32 %v235, %v49
    %v237 = vadd.f32 %v233, %v236
    %v238 = vmax.f32 %v237, 0.0
    %s239 = scalar_lea.vmem [#allocation2], 560
    %v240 = vld [vmem:[%s239] sm:$0xff]
    %s241 = scalar_lea.vmem [#allocation2], 400
    %v242 = vld [vmem:[%s241] sm:$0xff]
    %v243 = vmul.f32 %v242, %v67
    %v244 = vadd.f32 %v240, %v243
    %s245 = scalar_lea.vmem [#allocation2], 416
    %v246 = vld [vmem:[%s245] sm:$0xff]
    %v247 = vmul.f32 %v246, %v86
    %v248 = vadd.f32 %v244, %v247
    %s249 = scalar_lea.vmem [#allocation2], 432
    %v250 = vld [vmem:[%s249] sm:$0xff]
    %v251 = vmul.f32 %v250, %v105
    %v252 = vadd.f32 %v248, %v251
    %s253 = scalar_lea.vmem [#allocation2], 448
    %v254 = vld [vmem:[%s253] sm:$0xff]
    %v255 = vmul.f32 %v254, %v124
    %v256 = vadd.f32 %v252, %v255
    %s257 = scalar_lea.vmem [#allocation2], 464
    %v258 = vld [vmem:[%s257] sm:$0xff]
    %v259 = vmul.f32 %v258, %v143
    %v260 = vadd.f32 %v256, %v259
    %s261 = scalar_lea.vmem [#allocation2], 480
    %v262 = vld [vmem:[%s261] sm:$0xff]
    %v263 = vmul.f32 %v262, %v162
    %v264 = vadd.f32 %v260, %v263
    %s265 = scalar_lea.vmem [#allocation2], 496
    %v266 = vld [vmem:[%s265] sm:$0xff]
    %v267 = vmul.f32 %v266, %v181
    %v268 = vadd.f32 %v264, %v267
    %s269 = scalar_lea.vmem [#allocation2], 512
    %v270 = vld [vmem:[%s269] sm:$0xff]
    %v271 = vmul.f32 %v270, %v200
    %v272 = vadd.f32 %v268, %v271
    %s273 = scalar_lea.vmem [#allocation2], 528
    %v274 = vld [vmem:[%s273] sm:$0xff]
    %v275 = vmul.f32 %v274, %v219
    %v276 = vadd.f32 %v272, %v275
    %s277 = scalar_lea.vmem [#allocation2], 544
    %v278 = vld [vmem:[%s277] sm:$0xff]
    %v279 = vmul.f32 %v278, %v238
    %v280 = vadd.f32 %v276, %v279
    %281 = vst [vmem:[#allocation7] sm:$0xff] %v280
    %s282 = scalar_lea.vmem [#allocation2], 568
    %v283 = vld [vmem:[%s282] sm:$0xff]
    %s284 = scalar_lea.vmem [#allocation2], 408
    %v285 = vld [vmem:[%s284] sm:$0xff]
    %v286 = vmul.f32 %v285, %v67
    %v287 = vadd.f32 %v283, %v286
    %s288 = scalar_lea.vmem [#allocation2], 424
    %v289 = vld [vmem:[%s288] sm:$0xff]
    %v290 = vmul.f32 %v289, %v86
    %v291 = vadd.f32 %v287, %v290
    %s292 = scalar_lea.vmem [#allocation2], 440
    %v293 = vld [vmem:[%s292] sm:$0xff]
    %v294 = vmul.f32 %v293, %v105
    %v295 = vadd.f32 %v291, %v294
    %s296 = scalar_lea.vmem [#allocation2], 456
    %v297 = vld [vmem:[%s296] sm:$0xff]
    %v298 = vmul.f32 %v297, %v124
    %v299 = vadd.f32 %v295, %v298
    %s300 = scalar_lea.vmem [#allocation2], 472
    %v301 = vld [vmem:[%s300] sm:$0xff]
    %v302 = vmul.f32 %v301, %v143
    %v303 = vadd.f32 %v299, %v302
    %s304 = scalar_lea.vmem [#allocation2], 488
    %v305 = vld [vmem:[%s304] sm:$0xff]
    %v306 = vmul.f32 %v305, %v162
    %v307 = vadd.f32 %v303, %v306
    %s308 = scalar_lea.vmem [#allocation2], 504
    %v309 = vld [vmem:[%s308] sm:$0xff]
    %v310 = vmul.f32 %v309, %v181
    %v311 = vadd.f32 %v307, %v310
    %s312 = scalar_lea.vmem [#allocation2], 520
    %v313 = vld [vmem:[%s312] sm:$0xff]
    %v314 = vmul.f32 %v313, %v200
    %v315 = vadd.f32 %v311, %v314
    %s316 = scalar_lea.vmem [#allocation2], 536
    %v317 = vld [vmem:[%s316] sm:$0xff]
    %v318 = vmul.f32 %v317, %v219
    %v319 = vadd.f32 %v315, %v318
    %s320 = scalar_lea.vmem [#allocation2], 552
    %v321 = vld [vmem:[%s320] sm:$0xff]
    %v322 = vmul.f32 %v321, %v238
    %v323 = vadd.f32 %v319, %v322
    %s324 = scalar_lea.vmem [#allocation7], %s41
    %325 = vst [vmem:[%s324] sm:$0xff] %v323
    // Predicated region
    $region18: #{tpu_custom_call.1} parent=1 // pred_check
      _
    $region19: #{tpu_custom_call.1} parent=1 // pred_check_branch
      %327 = sbr.rel (0) target = $region21
    $region20: #{tpu_custom_call.1} parent=1 // pred_region
      %s329 = ssub.s32 256, 256
      %330 = vsyncadd [#allocation4], %s329
      %s331 = sshll.u32 [#allocation7], 4
      %s332 = int_to_ptr.vmem [resolvable:$true] %s331
      %337 = dma.vmem_to_hbm [thread:$0]  %s332, 256, %s2, [#allocation4], 128, 128, 8
    $region21: #{tpu_custom_call.1} parent=1 // pred_fallthru
      _
    // Predicated region
    $region22: #{tpu_custom_call.1} parent=1 // pred_check
      _
    $region23: #{tpu_custom_call.1} parent=1 // pred_check_branch
      %339 = sbr.rel (0) target = $region25
    $region24: #{tpu_custom_call.1} parent=1 // pred_region
      %340 = dma.done [#allocation4], 256
    $region25: #{tpu_custom_call.1} parent=1 // pred_fallthru
      _
    %341 = vsyncpa [#allocation3], 1
    %342 = vsyncpa [#allocation6], 1
    %343 = vsyncpa [#allocation4], 1

</llo_original>
